<compile_context>
chip_gen: v7x
topology: tpu7x:2x2x1
jax: 0.10.0
libtpu: 0.0.40
codegen_flags: <defaults>
</compile_context>

<pallas_src>
import functools

import jax
import jax.numpy as jnp
from jax import lax
from jax.experimental import pallas as pl
from jax.experimental.pallas import tpu as pltpu


def _softplus(x):
    # Numerically stable softplus, matches torch.nn.Softplus (beta=1).
    return jnp.maximum(x, 0.0) + jnp.log1p(jnp.exp(-jnp.abs(x)))


# ----------------------------- kernels ---------------------------------------


def _softplus_loss_kernel(p_ref, n_ref, out_ref, *, batch, block_rows,
                          inv_bp, inv_bn, mask_tail):
    i = pl.program_id(0)

    def compute(mask):
        p = p_ref[...].astype(jnp.float32)
        n = n_ref[...].astype(jnp.float32)
        sp_p = _softplus(-p)
        sp_n = _softplus(n)
        if mask:
            # Tail rows of the last block are out-of-bounds garbage.  They are
            # zeroed here AFTER softplus; this is safe because the select does
            # not propagate NaN/Inf from the unselected operand.
            row = i * block_rows + lax.broadcasted_iota(
                jnp.int32, (block_rows, 1), 0)
            valid = row < batch
            sp_p = jnp.where(valid, sp_p, 0.0)
            sp_n = jnp.where(valid, sp_n, 0.0)
        # Partial sums scaled by the FULL element counts (no per-tile means).
        partial = 0.5 * (jnp.sum(sp_p) * inv_bp + jnp.sum(sp_n) * inv_bn)
        out_ref[...] = jnp.broadcast_to(partial, (1, 8, 128)).astype(jnp.float32)

    if mask_tail:
        is_last = i == pl.num_programs(0) - 1

        @pl.when(jnp.logical_not(is_last))
        def _():
            compute(False)

        @pl.when(is_last)
        def _():
            compute(True)
    else:
        compute(False)


def _softplus_loss_adv_kernel(p_ref, n_ref, out_ref, *, batch, block_rows,
                              inv_bp, inv_b, temperature, mask_tail):
    i = pl.program_id(0)

    def compute(mask):
        p = p_ref[...].astype(jnp.float32)
        n = n_ref[...].astype(jnp.float32)
        sp_p = _softplus(-p)
        sp_n = _softplus(n)

        # softmax(n*T, -1)-weighted sum WITHOUT materializing normalized
        # weights: one reciprocal per row instead of a [TB, N] divide.
        scaled = n * temperature
        m = jnp.max(scaled, axis=-1, keepdims=True)
        e = jnp.exp(scaled - m)
        num = jnp.sum(e * sp_n, axis=-1, keepdims=True)        # (TB, 1)
        den = jnp.sum(e, axis=-1, keepdims=True)               # (TB, 1)
        weighted = num * pl.reciprocal(den, approx=False)      # exact (1e-5 tol)

        if mask:
            # See comment in the non-adv kernel: garbage tail rows can carry
            # NaN/Inf through the reductions above, but the select below does
            # not propagate from the unselected operand.
            row = i * block_rows + lax.broadcasted_iota(
                jnp.int32, (block_rows, 1), 0)
            valid = row < batch
            sp_p = jnp.where(valid, sp_p, 0.0)
            weighted = jnp.where(valid, weighted, 0.0)

        partial = 0.5 * (jnp.sum(sp_p) * inv_bp + jnp.sum(weighted) * inv_b)
        out_ref[...] = jnp.broadcast_to(partial, (1, 8, 128)).astype(jnp.float32)

    if mask_tail:
        is_last = i == pl.num_programs(0) - 1

        @pl.when(jnp.logical_not(is_last))
        def _():
            compute(False)

        @pl.when(is_last)
        def _():
            compute(True)
    else:
        compute(False)


# ----------------------------- wrapper ----------------------------------------


def _vmem_scope_bytes():
    """Generation-aware scoped-VMEM request (explicit vmem_limit_bytes)."""
    try:
        cap = int(pltpu.get_tpu_info().vmem_capacity_bytes)
    except Exception:
        cap = None
    if not cap or cap <= 0:
        cap = 64 * 1024 * 1024  # conservative: v7x per-core physical VMEM
    # Ask for at most half the physical VMEM, capped at 48 MiB:
    #   v5e/v6e (128 MiB physical) -> 48 MiB scope (vs 16/32 MiB defaults)
    #   v7x     ( 64 MiB physical) -> 32 MiB scope
    return min(48 * 1024 * 1024, cap // 2)


def _choose_block_rows(batch, row_bytes, scope_bytes):
    # One block set (p tile + n tile) uses ~40% of the scope so that the
    # double-buffered footprint (2x) plus the tiny output block fits.
    budget = int(scope_bytes * 0.40)
    tb = budget // max(row_bytes, 1)
    tb = (tb // 8) * 8
    if tb <= 0:
        tb = 8
    if tb >= batch:
        return batch  # single block covering the full batch (full-dim block ok)
    return tb


def softplus_loss(p_score, n_score, adv_temperature=None, block_rows=None):
    """Pallas implementation of SoftplusLoss.forward. Returns scalar f32."""
    assert p_score.ndim == 2 and n_score.ndim == 2
    B, P = p_score.shape
    Bn, N = n_score.shape
    assert B == Bn, "p_score and n_score must share the batch dimension"

    row_bytes = P * p_score.dtype.itemsize + N * n_score.dtype.itemsize
    scope = _vmem_scope_bytes()

    if block_rows is None:
        block_rows = _choose_block_rows(B, row_bytes, scope)
    else:
        # Clamp + round user-supplied value so the (8,128) second-minor tiling
        # rule holds (multiple of 8, or the full batch dimension).
        block_rows = min(int(block_rows), B)
        if block_rows < B:
            block_rows = max(8, (block_rows // 8) * 8)
        block_rows = min(block_rows, B)

    num_blocks = pl.cdiv(B, block_rows)
    mask_tail = (B % block_rows) != 0

    p_spec = pl.BlockSpec((block_rows, P), lambda i: (i, 0))
    n_spec = pl.BlockSpec((block_rows, N), lambda i: (i, 0))
    # Lane-dense per-block partial-sum output: each grid step owns one
    # (1, 8, 128) tile -> the batch axis can be megacore-sharded ("parallel").
    out_spec = pl.BlockSpec((1, 8, 128), lambda i: (i, 0, 0))
    out_shape = jax.ShapeDtypeStruct((num_blocks, 8, 128), jnp.float32)

    compiler_params = pltpu.CompilerParams(
        dimension_semantics=("parallel",),
        vmem_limit_bytes=scope,
    )

    inv_bp = 1.0 / float(B * P)
    in_bytes = B * P * p_score.dtype.itemsize + B * N * n_score.dtype.itemsize
    out_bytes = num_blocks * 8 * 128 * 4

    if adv_temperature is None:
        cost = pl.CostEstimate(
            flops=6 * (B * P + B * N),
            transcendentals=2 * (B * P + B * N),
            bytes_accessed=in_bytes + out_bytes,
        )
        kernel = functools.partial(
            _softplus_loss_kernel,
            batch=B, block_rows=block_rows,
            inv_bp=inv_bp, inv_bn=1.0 / float(B * N),
            mask_tail=mask_tail)
    else:
        cost = pl.CostEstimate(
            flops=6 * B * P + 10 * B * N,
            transcendentals=2 * B * P + 3 * B * N,
            bytes_accessed=in_bytes + out_bytes,
        )
        kernel = functools.partial(
            _softplus_loss_adv_kernel,
            batch=B, block_rows=block_rows,
            inv_bp=inv_bp, inv_b=1.0 / float(B),
            temperature=float(adv_temperature),
            mask_tail=mask_tail)

    partials = pl.pallas_call(
        kernel,
        out_shape=out_shape,
        grid=(num_blocks,),
        in_specs=[p_spec, n_spec],
        out_specs=out_spec,
        compiler_params=compiler_params,
        cost_estimate=cost,
    )(p_score, n_score)

    # Tiny final combine in the wrapper (num_blocks f32 adds).
    return jnp.sum(partials[:, 0, 0])


# ----------------------------- reference --------------------------------------


def _ref_loss(p_score, n_score, adv_temperature=None):
    p = p_score.astype(jnp.float32)
    n = n_score.astype(jnp.float32)
    sp_negp = jax.nn.softplus(-p)
    sp_n = jax.nn.softplus(n)
    if adv_temperature is None:
        return (jnp.mean(sp_negp) + jnp.mean(sp_n)) / 2.0
    w = jax.nn.softmax(n * adv_temperature, axis=-1)
    return (jnp.mean(sp_negp) + jnp.mean(jnp.sum(w * sp_n, axis=-1))) / 2.0


# ----------------------------- main --------------------------------------------


if __name__ == "__main__":
    key = jax.random.PRNGKey(0)
    kp1, kn1, kp2, kn2 = jax.random.split(key, 4)

    # --- Case 1: small batch -> single full-batch block (grid of 1) ----------
    B1, P1, N1 = 8, 128, 128
    p1 = jax.random.normal(kp1, (B1, P1), dtype=jnp.float32)
    n1 = jax.random.normal(kn1, (B1, N1), dtype=jnp.float32)

    out_plain = jax.block_until_ready(softplus_loss(p1, n1))
    ref_plain = _ref_loss(p1, n1)
    out_adv = jax.block_until_ready(softplus_loss(p1, n1, adv_temperature=1.0))
    ref_adv = _ref_loss(p1, n1, adv_temperature=1.0)

    assert jnp.allclose(out_plain, ref_plain, rtol=1e-5, atol=1e-5), (out_plain, ref_plain)
    assert jnp.allclose(out_adv, ref_adv, rtol=1e-5, atol=1e-5), (out_adv, ref_adv)

    # --- Case 2: batch not divisible by the block -> exercises the grid
    #     (3 steps, "parallel" axis) and the last-block tail masking path -----
    B2, P2, N2 = 20, 128, 256
    p2 = jax.random.normal(kp2, (B2, P2), dtype=jnp.float32)
    n2 = jax.random.normal(kn2, (B2, N2), dtype=jnp.float32)

    out_plain2 = jax.block_until_ready(softplus_loss(p2, n2, block_rows=8))
    ref_plain2 = _ref_loss(p2, n2)
    out_adv2 = jax.block_until_ready(
        softplus_loss(p2, n2, adv_temperature=0.5, block_rows=8))
    ref_adv2 = _ref_loss(p2, n2, adv_temperature=0.5)

    assert jnp.allclose(out_plain2, ref_plain2, rtol=1e-5, atol=1e-5), (out_plain2, ref_plain2)
    assert jnp.allclose(out_adv2, ref_adv2, rtol=1e-5, atol=1e-5), (out_adv2, ref_adv2)

    print("KERNEL_OK")
</pallas_src>

<mosaic_0001>
module attributes {stable_mosaic.version = 11 : i64} {
  func.func @_softplus_loss_kernel(%arg0: i32, %arg1: memref<8x128xf32, #tpu.memory_space<vmem>>, %arg2: memref<8x128xf32, #tpu.memory_space<vmem>>, %arg3: memref<1x8x128xf32, #tpu.memory_space<vmem>>) attributes {dimension_semantics = [#tpu.dimension_semantics<parallel>], iteration_bounds = array<i64: 1>, scalar_prefetch = 0 : i64, scratch_operands = 0 : i64, tpu.core_type = #tpu.core_type<tc>, window_params = [{transform_indices = @transform_0, window_bounds = array<i64: 8, 128>}, {transform_indices = @transform_1, window_bounds = array<i64: 8, 128>}, {transform_indices = @transform_2, window_bounds = array<i64: 1, 8, 128>}]} {
    %c0 = arith.constant 0 : index
    %c0_0 = arith.constant 0 : index
    %0 = vector.load %arg1[%c0, %c0_0] : memref<8x128xf32, #tpu.memory_space<vmem>>, vector<8x128xf32>
    %c0_1 = arith.constant 0 : index
    %c0_2 = arith.constant 0 : index
    %1 = vector.load %arg2[%c0_1, %c0_2] : memref<8x128xf32, #tpu.memory_space<vmem>>, vector<8x128xf32>
    %cst = arith.constant 0.000000e+00 : f32
    %2 = vector.broadcast %cst : f32 to vector<8x128xf32>
    %3 = arith.subf %2, %0 : vector<8x128xf32>
    %cst_3 = arith.constant 0.000000e+00 : f32
    %4 = vector.broadcast %cst_3 : f32 to vector<8x128xf32>
    %5 = arith.maximumf %3, %4 : vector<8x128xf32>
    %6 = math.absf %3 : vector<8x128xf32>
    %cst_4 = arith.constant 0.000000e+00 : f32
    %7 = vector.broadcast %cst_4 : f32 to vector<8x128xf32>
    %8 = arith.subf %7, %6 : vector<8x128xf32>
    %9 = math.exp %8 : vector<8x128xf32>
    %10 = math.log1p %9 : vector<8x128xf32>
    %11 = arith.addf %5, %10 : vector<8x128xf32>
    %cst_5 = arith.constant 0.000000e+00 : f32
    %12 = vector.broadcast %cst_5 : f32 to vector<8x128xf32>
    %13 = arith.maximumf %1, %12 : vector<8x128xf32>
    %14 = math.absf %1 : vector<8x128xf32>
    %cst_6 = arith.constant 0.000000e+00 : f32
    %15 = vector.broadcast %cst_6 : f32 to vector<8x128xf32>
    %16 = arith.subf %15, %14 : vector<8x128xf32>
    %17 = math.exp %16 : vector<8x128xf32>
    %18 = math.log1p %17 : vector<8x128xf32>
    %19 = arith.addf %13, %18 : vector<8x128xf32>
    %20 = vector.shape_cast %11 : vector<8x128xf32> to vector<1x8x128xf32>
    %cst_7 = arith.constant dense<0.000000e+00> : vector<1xf32>
    %21 = vector.multi_reduction <add>, %20, %cst_7 [1, 2] : vector<1x8x128xf32> to vector<1xf32>
    %22 = vector.shape_cast %21 : vector<1xf32> to vector<1x1x1xf32>
    %23 = vector.extract %22[0, 0, 0] : f32 from vector<1x1x1xf32>
    %cst_8 = arith.constant 9.765625E-4 : f32
    %24 = arith.mulf %23, %cst_8 : f32
    %25 = vector.shape_cast %19 : vector<8x128xf32> to vector<1x8x128xf32>
    %cst_9 = arith.constant dense<0.000000e+00> : vector<1xf32>
    %26 = vector.multi_reduction <add>, %25, %cst_9 [1, 2] : vector<1x8x128xf32> to vector<1xf32>
    %27 = vector.shape_cast %26 : vector<1xf32> to vector<1x1x1xf32>
    %28 = vector.extract %27[0, 0, 0] : f32 from vector<1x1x1xf32>
    %cst_10 = arith.constant 9.765625E-4 : f32
    %29 = arith.mulf %28, %cst_10 : f32
    %30 = arith.addf %24, %29 : f32
    %cst_11 = arith.constant 5.000000e-01 : f32
    %31 = arith.mulf %cst_11, %30 : f32
    %32 = vector.broadcast %31 : f32 to vector<1x8x128xf32>
    %c0_12 = arith.constant 0 : index
    %c0_13 = arith.constant 0 : index
    %c0_14 = arith.constant 0 : index
    %33 = vector.load %arg3[%c0_12, %c0_13, %c0_14] : memref<1x8x128xf32, #tpu.memory_space<vmem>>, vector<1x8x128xf32>
    tpu.vector_store %arg3[%c0_12, %c0_13, %c0_14], %32 {strides = array<i32>} : memref<1x8x128xf32, #tpu.memory_space<vmem>>, vector<1x8x128xf32>,
    return
  }
  func.func @transform_0(%arg0: i32) -> (i32, i32) {
    %c0_i32 = arith.constant 0 : i32
    %c0_i32_0 = arith.constant 0 : i32
    return %arg0, %c0_i32 : i32, i32
  }
  func.func @transform_1(%arg0: i32) -> (i32, i32) {
    %c0_i32 = arith.constant 0 : i32
    %c0_i32_0 = arith.constant 0 : i32
    return %arg0, %c0_i32 : i32, i32
  }
  func.func @transform_2(%arg0: i32) -> (i32, i32, i32) {
    %c0_i32 = arith.constant 0 : i32
    %c0_i32_0 = arith.constant 0 : i32
    %c0_i32_1 = arith.constant 0 : i32
    return %arg0, %c0_i32, %c0_i32_0 : i32, i32, i32
  }
}

</mosaic_0001>

<llo_original>
// kernel: tpu_custom_call.1
$region0: #{tpu_custom_call.1}
  #allocation0 [shape = 'u32[]', space=smem, size = 0x4, offset = 0x4, fixed_abs, tag = 'smem constant byte address 0x4 - core index']
  #allocation1 [shape = 'u32[144,128]{1,0:T(1,128)}', space=vmem, size = 0x12000, scoped, tag = 'internal scratch']
  %s0 = inlined_call_operand.hbm [shape: f32[8,128], index: 0, kind: input, shape index: {}]
  %s1 = inlined_call_operand.hbm [shape: f32[8,128], index: 1, kind: input, shape index: {}]
  %s2 = inlined_call_operand.hbm [shape: f32[1,8,128], index: 2, kind: output, shape index: {}]
  %s3 = sld [smem:[#allocation0]]
  $region26: #{tpu_custom_call.1} parent=0
    _
  %s5 = ssub.s32 1, %s3
  %s6 = scalar_select 0, %s5, %s3
  $region1: #{tpu_custom_call.1} parent=0
    #allocation2 [shape = 'u8[4096]{0}', space=vmem, size = 0x1000, scoped, tag = 'input window, operand 0, single buffered']
    #allocation3 [shape = 's32[1]{0}', space=sflag, size = 0x4, scoped, tag = 'scoped memory for tpu_custom_call.1']
    #allocation4 [shape = 's32[1]{0}', space=sflag, size = 0x4, scoped, tag = 'scoped memory for tpu_custom_call.1']
    #allocation5 [shape = 'u8[4096]{0}', space=vmem, size = 0x1000, scoped, tag = 'input window, operand 1, single buffered']
    #allocation6 [shape = 's32[1]{0}', space=sflag, size = 0x4, scoped, tag = 'scoped memory for tpu_custom_call.1']
    #allocation7 [shape = 'u8[4096]{0}', space=vmem, size = 0x1000, scoped, tag = 'output window, operand 0, single buffered']
    %7 = vsyncpa [#allocation3], 0
    %8 = vsyncpa [#allocation6], 0
    %9 = vsyncpa [#allocation4], 0
    // Predicated region
    $region2: #{tpu_custom_call.1} parent=1 // pred_check
      _
    $region3: #{tpu_custom_call.1} parent=1 // pred_check_branch
      %11 = sbr.rel (0) target = $region5
    $region4: #{tpu_custom_call.1} parent=1 // pred_region
      %s13 = ssub.s32 128, 128
      %14 = vsyncadd [#allocation3], %s13
      %s16 = sshll.u32 [#allocation2], 4
      %s17 = int_to_ptr.vmem [resolvable:$true] %s16
      %19 = dma.hbm_to_vmem [thread:$0]  %s0, 128, %s17, [#allocation3]
    $region5: #{tpu_custom_call.1} parent=1 // pred_fallthru
      _
    // Predicated region
    $region6: #{tpu_custom_call.1} parent=1 // pred_check
      _
    $region7: #{tpu_custom_call.1} parent=1 // pred_check_branch
      %21 = sbr.rel (0) target = $region9
    $region8: #{tpu_custom_call.1} parent=1 // pred_region
      %s23 = ssub.s32 128, 128
      %24 = vsyncadd [#allocation6], %s23
      %s26 = sshll.u32 [#allocation5], 4
      %s27 = int_to_ptr.vmem [resolvable:$true] %s26
      %29 = dma.hbm_to_vmem [thread:$0]  %s1, 128, %s27, [#allocation6]
    $region9: #{tpu_custom_call.1} parent=1 // pred_fallthru
      _
    // Predicated region
    $region10: #{tpu_custom_call.1} parent=1 // pred_check
      _
    $region11: #{tpu_custom_call.1} parent=1 // pred_check_branch
      %31 = sbr.rel (0) target = $region13
    $region12: #{tpu_custom_call.1} parent=1 // pred_region
      %32 = dma.done [#allocation3], 128
    $region13: #{tpu_custom_call.1} parent=1 // pred_fallthru
      _
    // Predicated region
    $region14: #{tpu_custom_call.1} parent=1 // pred_check
      _
    $region15: #{tpu_custom_call.1} parent=1 // pred_check_branch
      %34 = sbr.rel (0) target = $region17
    $region16: #{tpu_custom_call.1} parent=1 // pred_region
      %35 = dma.done [#allocation6], 128
    $region17: #{tpu_custom_call.1} parent=1 // pred_fallthru
      _
    %v36 = vld [vmem:[#allocation2] sm:$0xff]
    %v37 = vld [vmem:[#allocation5] sm:$0xff]
    %v38 = vsub.f32 0.0, %v36
    %v39 = vmax.f32 %v38, 0.0
    %v40 = vand.u32 2147483647, %v38
    %v41 = vsub.f32 0.0, %v40
    %v42 = vmul.f32 %v41, 1.442695
    %v43 = vpow.pop %v42
    %v44 = vadd.f32 %v43, 1.0
    %v45 = vlog2.pop %v44
    %v46 = vmul.f32 %v45, 0.6931472
    %v47 = vmul.f32 -0.5, %v43
    %v48 = vadd.f32 %v47, 1.0
    %v49 = vmul.f32 %v48, %v43
    %v50 = vand.u32 2147483647, %v43
    %vm51 = vcmp.lt.f32.partialorder %v50, 0.0004427343
    %v52 = vsel %vm51, %v49, %v46
    %v53 = vadd.f32 %v39, %v52
    %v54 = vmax.f32 %v37, 0.0
    %v55 = vand.u32 2147483647, %v37
    %v56 = vsub.f32 0.0, %v55
    %v57 = vmul.f32 %v56, 1.442695
    %v58 = vpow.pop %v57
    %v59 = vadd.f32 %v58, 1.0
    %v60 = vlog2.pop %v59
    %v61 = vmul.f32 %v60, 0.6931472
    %v62 = vmul.f32 -0.5, %v58
    %v63 = vadd.f32 %v62, 1.0
    %v64 = vmul.f32 %v63, %v58
    %v65 = vand.u32 2147483647, %v58
    %vm66 = vcmp.lt.f32.partialorder %v65, 0.0004427343
    %v67 = vsel %vm66, %v64, %v61
    %v68 = vadd.f32 %v54, %v67
    %69 = vadd.xlane.f32.xlu0 %v53
    %v70 = vpop.xlane.xlu0 %69
    %v71 = vrot.slane %v70, 4
    %v72 = vadd.f32 %v70, %v71
    %v73 = vrot.slane %v72, 2
    %v74 = vadd.f32 %v72, %v73
    %v75 = vrot.slane %v74, 1
    %v76 = vadd.f32 %v74, %v75
    %s77 = vtos %v76
    %s78 = smul.f32 %s77, 0.0009765625
    %79 = vadd.xlane.f32.xlu0 %v68
    %v80 = vpop.xlane.xlu0 %79
    %v81 = vrot.slane %v80, 4
    %v82 = vadd.f32 %v80, %v81
    %v83 = vrot.slane %v82, 2
    %v84 = vadd.f32 %v82, %v83
    %v85 = vrot.slane %v84, 1
    %v86 = vadd.f32 %v84, %v85
    %s87 = vtos %v86
    %s88 = smul.f32 %s87, 0.0009765625
    %s89 = sadd.f32 %s78, %s88
    %s90 = smul.f32 %s89, 0.5
    %v91 = vstv %s90
    %92 = vst [vmem:[#allocation7] sm:$0xff] %v91
    // Predicated region
    $region18: #{tpu_custom_call.1} parent=1 // pred_check
      _
    $region19: #{tpu_custom_call.1} parent=1 // pred_check_branch
      %94 = sbr.rel (0) target = $region21
    $region20: #{tpu_custom_call.1} parent=1 // pred_region
      %s96 = ssub.s32 128, 128
      %97 = vsyncadd [#allocation4], %s96
      %s99 = sshll.u32 [#allocation7], 4
      %s100 = int_to_ptr.vmem [resolvable:$true] %s99
      %102 = dma.vmem_to_hbm [thread:$0]  %s100, 128, %s2, [#allocation4]
    $region21: #{tpu_custom_call.1} parent=1 // pred_fallthru
      _
    // Predicated region
    $region22: #{tpu_custom_call.1} parent=1 // pred_check
      _
    $region23: #{tpu_custom_call.1} parent=1 // pred_check_branch
      %104 = sbr.rel (0) target = $region25
    $region24: #{tpu_custom_call.1} parent=1 // pred_region
      %105 = dma.done [#allocation4], 128
    $region25: #{tpu_custom_call.1} parent=1 // pred_fallthru
      _
    %106 = vsyncpa [#allocation3], 1
    %107 = vsyncpa [#allocation6], 1
    %108 = vsyncpa [#allocation4], 1

</llo_original>
